<compile_context>
chip_gen: v7x
topology: tpu7x:2x2x1
jax: 0.10.0
libtpu: 0.0.40
codegen_flags: <defaults>
</compile_context>

<pallas_src>
import jax
import jax.numpy as jnp
from jax.experimental import pallas as pl
from jax.experimental.pallas import tpu as pltpu

LANE = 128  # lane width of a vreg


def _central_angle_kernel(data_ref, out_ref, acc_ref):
    """data_ref: (4, block_rows, 128) = [p_lat, p_lon, t_lat, t_lon] planes."""
    i = pl.program_id(1)  # reduction axis (last)

    @pl.when(i == 0)
    def _init():
        acc_ref[...] = jnp.zeros_like(acc_ref)

    # Cast to f32 inside the kernel (inputs DMA'd in their native dtype).
    p_lat = data_ref[0].astype(jnp.float32) * 25.0 + 15.0
    p_lon = data_ref[1].astype(jnp.float32) * 360.0
    t_lat = data_ref[2].astype(jnp.float32) * 25.0 + 15.0
    t_lon = data_ref[3].astype(jnp.float32) * 360.0

    # abs() dropped: cos is even and sin(diff_lon) only enters via a*a, so the
    # result is unchanged (one fewer VPU op per element).
    diff_lon = p_lon - t_lon

    cos_tlat = jnp.cos(t_lat)
    sin_tlat = jnp.sin(t_lat)
    cos_plat = jnp.cos(p_lat)
    sin_plat = jnp.sin(p_lat)
    cos_dlon = jnp.cos(diff_lon)
    sin_dlon = jnp.sin(diff_lon)

    ctcd = cos_tlat * cos_dlon  # shared sub-expression of b and d
    a = cos_tlat * sin_dlon
    b = cos_plat * sin_tlat - sin_plat * ctcd
    c = jnp.sqrt(a * a + b * b)
    d = sin_plat * sin_tlat + cos_plat * ctcd

    err = jnp.arctan2(c, d)  # (block_rows, LANE) f32; padded rows give atan2(0,1)=0

    # VPU-only accumulation: collapse row groups onto an (8, 128) vreg-shaped
    # accumulator; no cross-lane work in the hot loop.
    acc_ref[...] += jnp.sum(err.reshape(-1, 8, LANE), axis=0)

    @pl.when(i == pl.num_programs(1) - 1)
    def _finalize():
        # Single XLU lane/sublane reduce + lane-sparse (1,1) store, once per partial.
        out_ref[...] = jnp.sum(acc_ref[...], keepdims=True)


def _default_num_partials():
    # 2-way leading "parallel" split only pays off on multi-TensorCore chips (v7x);
    # on single-TC chips (v5e/v6e) it just adds padding + per-step overhead.
    try:
        kind = jax.devices()[0].device_kind.lower()
        if "v7" in kind:
            return 2
    except Exception:
        pass
    return 1


def central_angle_loss(pred, true, *, max_block_rows=2048, num_partials=None):
    """Pallas implementation of CentralAngleLoss.forward. Returns a 0-d f32."""
    assert pred.shape == true.shape and pred.ndim == 2 and pred.shape[1] == 2
    m = pred.shape[0]

    if num_partials is None:
        num_partials = _default_num_partials()

    packed_dtype = jnp.promote_types(pred.dtype, true.dtype)
    sublane = 16 if jnp.dtype(packed_dtype).itemsize < 4 else 8

    # ---- lane-dense repacking: ONE (4, padded_rows, 128) array ----
    rows_needed = pl.cdiv(m, LANE)
    if rows_needed >= max_block_rows:
        block_rows = max_block_rows
    else:
        block_rows = max(sublane, ((rows_needed + sublane - 1) // sublane) * sublane)
    blocks_needed = max(1, pl.cdiv(rows_needed, block_rows))
    blocks_per_partial = pl.cdiv(blocks_needed, num_partials)
    total_blocks = blocks_per_partial * num_partials
    padded_rows = total_blocks * block_rows
    padded_m = padded_rows * LANE

    # Single concat/transpose/pad/reshape instead of four per-column gathers.
    # Columns: [p_lat, p_lon, t_lat, t_lon].  Identical zero padding of pred &
    # true means padded rows contribute atan2(0, 1) = 0 exactly.
    both = jnp.concatenate([pred, true], axis=1)                 # (M, 4)
    planes = jnp.pad(both.T, ((0, 0), (0, padded_m - m)))        # (4, padded_m)
    planes = planes.reshape(4, padded_rows, LANE)                # (4, rows, 128)

    data_spec = pl.BlockSpec(
        (4, block_rows, LANE),
        lambda p, i, _bpp=blocks_per_partial: (0, p * _bpp + i, 0))

    in_bytes = padded_m * 4 * jnp.dtype(packed_dtype).itemsize
    cost = pl.CostEstimate(
        flops=16 * padded_m,
        transcendentals=8 * padded_m,
        bytes_accessed=in_bytes + num_partials * 4,
    )

    partials = pl.pallas_call(
        _central_angle_kernel,
        out_shape=jax.ShapeDtypeStruct((num_partials, 1), jnp.float32),
        grid_spec=pltpu.PrefetchScalarGridSpec(
            num_scalar_prefetch=0,
            grid=(num_partials, blocks_per_partial),
            in_specs=[data_spec],
            out_specs=pl.BlockSpec((1, 1), lambda p, i: (p, 0)),
            scratch_shapes=[pltpu.VMEM((8, LANE), jnp.float32)],
        ),
        compiler_params=pltpu.CompilerParams(
            dimension_semantics=("parallel", "arbitrary")),
        cost_estimate=cost,
    )(planes)

    # Combine per-core partial sums and divide by the ORIGINAL row count.
    return jnp.sum(partials) / m


def _reference(pred, true):
    # Pure-JAX reference mirroring the PyTorch forward exactly.
    m = pred.shape[0]
    p = pred.astype(jnp.float32)
    t = true.astype(jnp.float32)
    p = p.at[:, 0].set(p[:, 0] * 25 + 15)
    p = p.at[:, 1].set(p[:, 1] * 360)
    t = t.at[:, 0].set(t[:, 0] * 25 + 15)
    t = t.at[:, 1].set(t[:, 1] * 360)
    diff_lon = jnp.abs(p[:, 1] - t[:, 1])
    a = jnp.cos(t[:, 0]) * jnp.sin(diff_lon)
    b = (jnp.cos(p[:, 0]) * jnp.sin(t[:, 0])
         - jnp.sin(p[:, 0]) * jnp.cos(t[:, 0]) * jnp.cos(diff_lon))
    c = jnp.sqrt(a ** 2 + b ** 2)
    d = (jnp.sin(p[:, 0]) * jnp.sin(t[:, 0])
         + jnp.cos(p[:, 0]) * jnp.cos(t[:, 0]) * jnp.cos(diff_lon))
    error = jnp.arctan2(c, d)
    return jnp.sum(error, axis=0) / m


if __name__ == "__main__":
    key = jax.random.PRNGKey(0)

    # Small batch matching the module's expected (M, 2) [lat, lon]-like input.
    k1, k2 = jax.random.split(key)
    M = 8
    pred = jax.random.uniform(k1, (M, 2), dtype=jnp.float32)
    true = jax.random.uniform(k2, (M, 2), dtype=jnp.float32)
    out = jax.block_until_ready(central_angle_loss(pred, true))
    ref = jax.block_until_ready(_reference(pred, true))
    assert jnp.allclose(out, ref, rtol=1e-5, atol=1e-5), (out, ref)

    # Exercises intra-block zero padding.
    k3, k4 = jax.random.split(k2)
    M2 = 300
    pred2 = jax.random.uniform(k3, (M2, 2), dtype=jnp.float32)
    true2 = jax.random.uniform(k4, (M2, 2), dtype=jnp.float32)
    out2 = jax.block_until_ready(central_angle_loss(pred2, true2))
    ref2 = jax.block_until_ready(_reference(pred2, true2))
    assert jnp.allclose(out2, ref2, rtol=1e-5, atol=1e-5), (out2, ref2)

    # Exercises multi-block accumulation AND the 2-partial (v7x-style) path,
    # including a whole zero-padded block, regardless of the local chip.
    k5, k6 = jax.random.split(k4)
    M3 = 3000
    pred3 = jax.random.uniform(k5, (M3, 2), dtype=jnp.float32)
    true3 = jax.random.uniform(k6, (M3, 2), dtype=jnp.float32)
    out3 = jax.block_until_ready(
        central_angle_loss(pred3, true3, max_block_rows=8, num_partials=2))
    ref3 = jax.block_until_ready(_reference(pred3, true3))
    assert jnp.allclose(out3, ref3, rtol=1e-5, atol=1e-5), (out3, ref3)

    print("KERNEL_OK")
</pallas_src>

<mosaic_0001>
module attributes {stable_mosaic.version = 11 : i64} {
  func.func @_central_angle_kernel(%arg0: i32, %arg1: i32, %arg2: memref<4x8x128xf32, #tpu.memory_space<vmem>>, %arg3: memref<1x1xf32, #tpu.memory_space<vmem>>, %arg4: memref<8x128xf32, #tpu.memory_space<vmem>>) attributes {dimension_semantics = [#tpu.dimension_semantics<parallel>, #tpu.dimension_semantics<arbitrary>], iteration_bounds = array<i64: 1, 1>, scalar_prefetch = 0 : i64, scratch_operands = 1 : i64, tpu.core_type = #tpu.core_type<tc>, window_params = [{transform_indices = @transform_0, window_bounds = array<i64: 4, 8, 128>}, {transform_indices = @transform_1, window_bounds = array<i64: 1, 1>}]} {
    %c0_i32 = arith.constant 0 : i32
    %0 = arith.cmpi eq, %arg1, %c0_i32 : i32
    %1 = arith.extui %0 : i1 to i32
    %c0_i32_0 = arith.constant 0 : i32
    %2 = arith.cmpi ne, %1, %c0_i32_0 : i32
    scf.if %2 {
      %cst_21 = arith.constant 0.000000e+00 : f32
      %51 = vector.broadcast %cst_21 : f32 to vector<8x128xf32>
      %c0_22 = arith.constant 0 : index
      %c0_23 = arith.constant 0 : index
      %52 = vector.load %arg4[%c0_22, %c0_23] : memref<8x128xf32, #tpu.memory_space<vmem>>, vector<8x128xf32>
      tpu.vector_store %arg4[%c0_22, %c0_23], %51 {strides = array<i32>} : memref<8x128xf32, #tpu.memory_space<vmem>>, vector<8x128xf32>,
    } else {
    }
    %c0 = arith.constant 0 : index
    %c0_1 = arith.constant 0 : index
    %c0_2 = arith.constant 0 : index
    %3 = vector.load %arg2[%c0, %c0_1, %c0_2] : memref<4x8x128xf32, #tpu.memory_space<vmem>>, vector<1x8x128xf32>
    %4 = vector.shape_cast %3 : vector<1x8x128xf32> to vector<8x128xf32>
    %cst = arith.constant 2.500000e+01 : f32
    %5 = vector.broadcast %cst : f32 to vector<8x128xf32>
    %6 = arith.mulf %4, %5 : vector<8x128xf32>
    %cst_3 = arith.constant 1.500000e+01 : f32
    %7 = vector.broadcast %cst_3 : f32 to vector<8x128xf32>
    %8 = arith.addf %6, %7 : vector<8x128xf32>
    %c1 = arith.constant 1 : index
    %c0_4 = arith.constant 0 : index
    %c0_5 = arith.constant 0 : index
    %9 = vector.load %arg2[%c1, %c0_4, %c0_5] : memref<4x8x128xf32, #tpu.memory_space<vmem>>, vector<1x8x128xf32>
    %10 = vector.shape_cast %9 : vector<1x8x128xf32> to vector<8x128xf32>
    %cst_6 = arith.constant 3.600000e+02 : f32
    %11 = vector.broadcast %cst_6 : f32 to vector<8x128xf32>
    %12 = arith.mulf %10, %11 : vector<8x128xf32>
    %c2 = arith.constant 2 : index
    %c0_7 = arith.constant 0 : index
    %c0_8 = arith.constant 0 : index
    %13 = vector.load %arg2[%c2, %c0_7, %c0_8] : memref<4x8x128xf32, #tpu.memory_space<vmem>>, vector<1x8x128xf32>
    %14 = vector.shape_cast %13 : vector<1x8x128xf32> to vector<8x128xf32>
    %cst_9 = arith.constant 2.500000e+01 : f32
    %15 = vector.broadcast %cst_9 : f32 to vector<8x128xf32>
    %16 = arith.mulf %14, %15 : vector<8x128xf32>
    %cst_10 = arith.constant 1.500000e+01 : f32
    %17 = vector.broadcast %cst_10 : f32 to vector<8x128xf32>
    %18 = arith.addf %16, %17 : vector<8x128xf32>
    %c3 = arith.constant 3 : index
    %c0_11 = arith.constant 0 : index
    %c0_12 = arith.constant 0 : index
    %19 = vector.load %arg2[%c3, %c0_11, %c0_12] : memref<4x8x128xf32, #tpu.memory_space<vmem>>, vector<1x8x128xf32>
    %20 = vector.shape_cast %19 : vector<1x8x128xf32> to vector<8x128xf32>
    %cst_13 = arith.constant 3.600000e+02 : f32
    %21 = vector.broadcast %cst_13 : f32 to vector<8x128xf32>
    %22 = arith.mulf %20, %21 : vector<8x128xf32>
    %23 = arith.subf %12, %22 : vector<8x128xf32>
    %24 = math.cos %18 : vector<8x128xf32>
    %25 = math.sin %18 : vector<8x128xf32>
    %26 = math.cos %8 : vector<8x128xf32>
    %27 = math.sin %8 : vector<8x128xf32>
    %28 = math.cos %23 : vector<8x128xf32>
    %29 = math.sin %23 : vector<8x128xf32>
    %30 = arith.mulf %24, %28 : vector<8x128xf32>
    %31 = arith.mulf %24, %29 : vector<8x128xf32>
    %32 = arith.mulf %26, %25 : vector<8x128xf32>
    %33 = arith.mulf %27, %30 : vector<8x128xf32>
    %34 = arith.subf %32, %33 : vector<8x128xf32>
    %35 = arith.mulf %31, %31 : vector<8x128xf32>
    %36 = arith.mulf %34, %34 : vector<8x128xf32>
    %37 = arith.addf %35, %36 : vector<8x128xf32>
    %38 = math.sqrt %37 : vector<8x128xf32>
    %39 = arith.mulf %27, %25 : vector<8x128xf32>
    %40 = arith.mulf %26, %30 : vector<8x128xf32>
    %41 = arith.addf %39, %40 : vector<8x128xf32>
    %42 = math.atan2 %38, %41 : vector<8x128xf32>
    %c0_14 = arith.constant 0 : index
    %c0_15 = arith.constant 0 : index
    %43 = vector.load %arg4[%c0_14, %c0_15] : memref<8x128xf32, #tpu.memory_space<vmem>>, vector<8x128xf32>
    %44 = vector.shape_cast %42 : vector<8x128xf32> to vector<1x8x128xf32>
    %cst_16 = arith.constant dense<0.000000e+00> : vector<8x128xf32>
    %45 = vector.multi_reduction <add>, %44, %cst_16 [0] : vector<1x8x128xf32> to vector<8x128xf32>
    %46 = arith.addf %43, %45 : vector<8x128xf32>
    %c0_17 = arith.constant 0 : index
    %c0_18 = arith.constant 0 : index
    %47 = vector.load %arg4[%c0_17, %c0_18] : memref<8x128xf32, #tpu.memory_space<vmem>>, vector<8x128xf32>
    tpu.vector_store %arg4[%c0_17, %c0_18], %46 {strides = array<i32>} : memref<8x128xf32, #tpu.memory_space<vmem>>, vector<8x128xf32>,
    %c0_i32_19 = arith.constant 0 : i32
    %48 = arith.cmpi eq, %arg1, %c0_i32_19 : i32
    %49 = arith.extui %48 : i1 to i32
    %c0_i32_20 = arith.constant 0 : i32
    %50 = arith.cmpi ne, %49, %c0_i32_20 : i32
    scf.if %50 {
      %c0_21 = arith.constant 0 : index
      %c0_22 = arith.constant 0 : index
      %51 = vector.load %arg4[%c0_21, %c0_22] : memref<8x128xf32, #tpu.memory_space<vmem>>, vector<8x128xf32>
      %52 = vector.shape_cast %51 : vector<8x128xf32> to vector<1x8x128xf32>
      %cst_23 = arith.constant dense<0.000000e+00> : vector<1xf32>
      %53 = vector.multi_reduction <add>, %52, %cst_23 [1, 2] : vector<1x8x128xf32> to vector<1xf32>
      %54 = vector.shape_cast %53 : vector<1xf32> to vector<1x1x1xf32>
      %55 = vector.extract %54[0, 0, 0] : f32 from vector<1x1x1xf32>
      %56 = vector.broadcast %55 : f32 to vector<1x1xf32>
      %c0_24 = arith.constant 0 : index
      %c0_25 = arith.constant 0 : index
      %57 = vector.load %arg3[%c0_24, %c0_25] : memref<1x1xf32, #tpu.memory_space<vmem>>, vector<1x1xf32>
      tpu.vector_store %arg3[%c0_24, %c0_25], %56 {strides = array<i32>} : memref<1x1xf32, #tpu.memory_space<vmem>>, vector<1x1xf32>,
    } else {
    }
    return
  }
  func.func @transform_0(%arg0: i32, %arg1: i32) -> (i32, i32, i32) {
    %c1_i32 = arith.constant 1 : i32
    %0 = arith.muli %arg0, %c1_i32 : i32
    %1 = arith.addi %0, %arg1 : i32
    %c0_i32 = arith.constant 0 : i32
    %c0_i32_0 = arith.constant 0 : i32
    %c0_i32_1 = arith.constant 0 : i32
    return %c0_i32, %1, %c0_i32_0 : i32, i32, i32
  }
  func.func @transform_1(%arg0: i32, %arg1: i32) -> (i32, i32) {
    %c0_i32 = arith.constant 0 : i32
    %c0_i32_0 = arith.constant 0 : i32
    return %arg0, %c0_i32 : i32, i32
  }
}

</mosaic_0001>

<llo_original>
// kernel: tpu_custom_call.1
$region0: #{tpu_custom_call.1}
  #allocation0 [shape = 'u32[]', space=smem, size = 0x4, offset = 0x4, fixed_abs, tag = 'smem constant byte address 0x4 - core index']
  #allocation1 [shape = 'u32[144,128]{1,0:T(1,128)}', space=vmem, size = 0x12000, scoped, tag = 'internal scratch']
  #allocation2 [shape = 'f32[8,128]{1,0:T(8,128)}', space=vmem, size = 0x1000, scoped, tag = 'scratch operand']
  %s0 = inlined_call_operand.hbm [shape: f32[4,8,128], index: 0, kind: input, shape index: {}]
  %s1 = inlined_call_operand.hbm [shape: f32[1,1], index: 1, kind: output, shape index: {}]
  %s2 = sld [smem:[#allocation0]]
  $region26: #{tpu_custom_call.1} parent=0
    _
  %s4 = ssub.s32 1, %s2
  %s5 = scalar_select 0, %s4, %s2
  $region1: #{tpu_custom_call.1} parent=0
    #allocation3 [shape = 'u8[16384]{0}', space=vmem, size = 0x4000, scoped, tag = 'input window, operand 0, single buffered']
    #allocation4 [shape = 's32[1]{0}', space=sflag, size = 0x4, scoped, tag = 'scoped memory for tpu_custom_call.1']
    #allocation5 [shape = 's32[1]{0}', space=sflag, size = 0x4, scoped, tag = 'scoped memory for tpu_custom_call.1']
    #allocation6 [shape = 'u8[512]{0}', space=vmem, size = 0x400, scoped, tag = 'output window, operand 0, single buffered']
    %6 = vsyncpa [#allocation4], 0
    %7 = vsyncpa [#allocation5], 0
    // Predicated region
    $region2: #{tpu_custom_call.1} parent=1 // pred_check
      _
    $region3: #{tpu_custom_call.1} parent=1 // pred_check_branch
      %9 = sbr.rel (0) target = $region5
    $region4: #{tpu_custom_call.1} parent=1 // pred_region
      %s10 = sadd.s32 0, 0
      %s12 = ssub.s32 512, 512
      %13 = vsyncadd [#allocation4], %s12
      %s14 = smul.addr %s10, 128
      %s15 = scalar_lea.hbm %s0, %s14
      %s16 = sshll.u32 [#allocation3], 4
      %s17 = int_to_ptr.vmem [resolvable:$true] %s16
      %22 = dma.hbm_to_vmem [thread:$0]  %s15, 512, %s17, [#allocation4], 128, 128, 8
    $region5: #{tpu_custom_call.1} parent=1 // pred_fallthru
      _
    // Predicated region
    $region6: #{tpu_custom_call.1} parent=1 // pred_check
      _
    $region7: #{tpu_custom_call.1} parent=1 // pred_check_branch
      %24 = sbr.rel (0) target = $region9
    $region8: #{tpu_custom_call.1} parent=1 // pred_region
      %25 = dma.done [#allocation4], 512
    $region9: #{tpu_custom_call.1} parent=1 // pred_fallthru
      _
    %s26 = sadd.s32 0, 0
    %p27 = scmp.eq.s32.totalorder 0, 0
    // Predicated region
    $region10: #{tpu_custom_call.1} parent=1 // pred_check
      %p28 = pneg %p27
    $region11: #{tpu_custom_call.1} parent=1 // pred_check_branch
      %30 = sbr.rel (%p28) target = $region13
    $region12: #{tpu_custom_call.1} parent=1 // pred_region
      %31 = vst [vmem:[#allocation2] sm:$0xff] 0.0
    $region13: #{tpu_custom_call.1} parent=1 // pred_fallthru
      _
    %v32 = vld [vmem:[#allocation3] sm:$0xff]
    %v33 = vmul.f32 %v32, 25.0
    %v34 = vadd.f32 %v33, 15.0
    %s35 = scalar_lea.vmem [#allocation3], 8
    %v36 = vld [vmem:[%s35] sm:$0xff]
    %v37 = vmul.f32 %v36, 360.0
    %s38 = scalar_lea.vmem [#allocation3], 16
    %v39 = vld [vmem:[%s38] sm:$0xff]
    %v40 = vmul.f32 %v39, 25.0
    %v41 = vadd.f32 %v40, 15.0
    %s42 = scalar_lea.vmem [#allocation3], 24
    %v43 = vld [vmem:[%s42] sm:$0xff]
    %v44 = vmul.f32 %v43, 360.0
    %v45 = vsub.f32 %v37, %v44
    %v46 = vand.u32 2147483647, %v41
    %vm47 = vcmp.le.f32.partialorder %v46, 0.7853982
    %vm48 = vcmp.lt.s32.totalorder %v41, 0
    %v49 = vand.u32 %v41, 2139095040
    %v50 = vshrl.u32 %v49, 23
    %v51 = vsub.s32 %v50, 127
    %v52 = vand.u32 2147483647, %v41
    %v53 = vand.u32 %v52, 8388607
    %v54 = vor.u32 %v53, 8388608
    %v55 = vsub.s32 0, %v54
    %v56 = vadd.s32 %v51, 1
    %vm57 = vcmp.gt.s32.totalorder %v56, 0
    %v58 = vsel %vm57, %v56, 0
    %v59 = vshrl.u32 %v58, 5
    %v60 = vand.u32 %v58, 31
    %v61 = vsub.s32 32, %v60
    %v62 = vshrl.u32 683565275, %v61
    %v63 = vshll.u32 683565275, %v60
    %v64 = vshrl.u32 2475754826, %v61
    %v65 = vor.u32 %v63, %v64
    %v66 = vshll.u32 2475754826, %v60
    %v67 = vshrl.u32 2131351028, %v61
    %v68 = vor.u32 %v66, %v67
    %v69 = vshll.u32 2131351028, %v60
    %v70 = vshrl.u32 2102212464, %v61
    %v71 = vor.u32 %v69, %v70
    %v72 = vshll.u32 2102212464, %v60
    %v73 = vshrl.u32 920167782, %v61
    %v74 = vor.u32 %v72, %v73
    %v75 = vshll.u32 920167782, %v60
    %v76 = vshrl.u32 1326507024, %v61
    %v77 = vor.u32 %v75, %v76
    %vm78 = vcmp.lt.s32.totalorder %v59, 1
    %vm79 = vcmp.lt.s32.totalorder %v59, 2
    %vm80 = vcmp.lt.s32.totalorder %v59, 3
    %vm81 = vcmp.lt.s32.totalorder %v59, 4
    %v82 = vsel %vm78, %v62, %v65
    %v83 = vsel %vm81, %v71, 2102212464
    %v84 = vsel %vm80, %v68, %v83
    %v85 = vsel %vm79, %v82, %v84
    %v86 = vsel %vm78, %v65, %v68
    %v87 = vsel %vm81, %v74, 920167782
    %v88 = vsel %vm80, %v71, %v87
    %v89 = vsel %vm79, %v86, %v88
    %v90 = vsel %vm78, %v68, %v71
    %v91 = vsel %vm81, %v77, 1326507024
    %v92 = vsel %vm80, %v74, %v91
    %v93 = vsel %vm79, %v90, %v92
    %v94 = vshll.u32 %v54, 8
    %v95 = vmul.u32.u64.compose %v94, %v93
    %v96 = vextract.low.u32 %v95
    %v97 = vextract.high.u32 %v95
    %v98 = vmul.u32.u64.compose %v94, %v89
    %v99 = vextract.low.u32 %v98
    %v100 = vextract.high.u32 %v98
    %v101 = vmul.u32 %v94, %v85
    %v102 = vadd.s32 %v97, %v99
    %vm103 = vc.u32 %v97, %v99
    %v104 = vadd.s32 %v100, 1
    %v105 = vsel %vm103, %v104, %v100
    %v106 = vadd.s32 %v101, %v105
    %v107 = vadd.s32 %v106, 536870912
    %v108 = vshrl.u32 %v107, 30
    %v109 = vshll.u32 %v108, 30
    %v110 = vsub.s32 %v106, %v109
    %vm111 = vcmp.lt.s32.totalorder %v110, 0
    %v112 = vsub.s32 0, %v110
    %v113 = vsel %vm111, %v112, %v110
    %v114 = vclz %v113
    %v115 = vsub.s32 %v114, 2
    %vm116 = vcmp.gt.s32.totalorder 0, %v115
    %v117 = vsel %vm116, 0, %v115
    %v118 = vsub.s32 32, %v117
    %v119 = vshll.u32 %v110, %v117
    %v120 = vshrl.u32 %v102, %v118
    %v121 = vor.u32 %v119, %v120
    %v122 = vsub.s32 4294967266, %v117
    %v123 = vadd.s32 %v122, 127
    %v124 = vshll.u32 %v123, 23
    %v125 = vor.u32 4788187, %v124
    %v126 = vand.u32 2147483647, %v125
    %v128 = vcvt.s32.f32 %v121
    %v129 = vmul.f32 %v128, %v126
    %v130 = vxor.u32 %v129, 2147483648
    %v131 = vsel %vm48, %v130, %v129
    %v132 = vsub.s32 4, %v108
    %v133 = vsel %vm48, %v132, %v108
    %v134 = vsel %vm47, %v41, %v131
    %v135 = vsel %vm47, 0, %v133
    %v136 = vcosq.f32.pop %v134
    %v137 = vsinq.f32.pop %v134
    %vm138 = vweird.f32 %v41
    %v139 = vand.u32 %v135, 3
    %vm140 = vcmp.lt.s32.totalorder %v139, 2
    %vm141 = vcmp.eq.s32.totalorder %v139, 0
    %v142 = vxor.u32 %v137, 2147483648
    %v143 = vsel %vm141, %v136, %v142
    %vm144 = vcmp.eq.s32.totalorder %v139, 2
    %v145 = vxor.u32 %v136, 2147483648
    %v146 = vsel %vm144, %v145, %v137
    %v147 = vsel %vm140, %v143, %v146
    %v148 = vsel %vm138, nan, %v147
    %v149 = vand.u32 2147483647, %v41
    %vm150 = vcmp.le.f32.partialorder %v149, 0.7853982
    %vm151 = vcmp.lt.s32.totalorder %v41, 0
    %v152 = vand.u32 %v41, 2139095040
    %v153 = vshrl.u32 %v152, 23
    %v154 = vsub.s32 %v153, 127
    %v155 = vand.u32 2147483647, %v41
    %v156 = vand.u32 %v155, 8388607
    %v157 = vor.u32 %v156, 8388608
    %v158 = vsub.s32 0, %v157
    %v159 = vadd.s32 %v154, 1
    %vm160 = vcmp.gt.s32.totalorder %v159, 0
    %v161 = vsel %vm160, %v159, 0
    %v162 = vshrl.u32 %v161, 5
    %v163 = vand.u32 %v161, 31
    %v164 = vsub.s32 32, %v163
    %v165 = vshrl.u32 683565275, %v164
    %v166 = vshll.u32 683565275, %v163
    %v167 = vshrl.u32 2475754826, %v164
    %v168 = vor.u32 %v166, %v167
    %v169 = vshll.u32 2475754826, %v163
    %v170 = vshrl.u32 2131351028, %v164
    %v171 = vor.u32 %v169, %v170
    %v172 = vshll.u32 2131351028, %v163
    %v173 = vshrl.u32 2102212464, %v164
    %v174 = vor.u32 %v172, %v173
    %v175 = vshll.u32 2102212464, %v163
    %v176 = vshrl.u32 920167782, %v164
    %v177 = vor.u32 %v175, %v176
    %v178 = vshll.u32 920167782, %v163
    %v179 = vshrl.u32 1326507024, %v164
    %v180 = vor.u32 %v178, %v179
    %vm181 = vcmp.lt.s32.totalorder %v162, 1
    %vm182 = vcmp.lt.s32.totalorder %v162, 2
    %vm183 = vcmp.lt.s32.totalorder %v162, 3
    %vm184 = vcmp.lt.s32.totalorder %v162, 4
    %v185 = vsel %vm181, %v165, %v168
    %v186 = vsel %vm184, %v174, 2102212464
    %v187 = vsel %vm183, %v171, %v186
    %v188 = vsel %vm182, %v185, %v187
    %v189 = vsel %vm181, %v168, %v171
    %v190 = vsel %vm184, %v177, 920167782
    %v191 = vsel %vm183, %v174, %v190
    %v192 = vsel %vm182, %v189, %v191
    %v193 = vsel %vm181, %v171, %v174
    %v194 = vsel %vm184, %v180, 1326507024
    %v195 = vsel %vm183, %v177, %v194
    %v196 = vsel %vm182, %v193, %v195
    %v197 = vshll.u32 %v157, 8
    %v198 = vmul.u32.u64.compose %v197, %v196
    %v199 = vextract.low.u32 %v198
    %v200 = vextract.high.u32 %v198
    %v201 = vmul.u32.u64.compose %v197, %v192
    %v202 = vextract.low.u32 %v201
    %v203 = vextract.high.u32 %v201
    %v204 = vmul.u32 %v197, %v188
    %v205 = vadd.s32 %v200, %v202
    %vm206 = vc.u32 %v200, %v202
    %v207 = vadd.s32 %v203, 1
    %v208 = vsel %vm206, %v207, %v203
    %v209 = vadd.s32 %v204, %v208
    %v210 = vadd.s32 %v209, 536870912
    %v211 = vshrl.u32 %v210, 30
    %v212 = vshll.u32 %v211, 30
    %v213 = vsub.s32 %v209, %v212
    %vm214 = vcmp.lt.s32.totalorder %v213, 0
    %v215 = vsub.s32 0, %v213
    %v216 = vsel %vm214, %v215, %v213
    %v217 = vclz %v216
    %v218 = vsub.s32 %v217, 2
    %vm219 = vcmp.gt.s32.totalorder 0, %v218
    %v220 = vsel %vm219, 0, %v218
    %v221 = vsub.s32 32, %v220
    %v222 = vshll.u32 %v213, %v220
    %v223 = vshrl.u32 %v205, %v221
    %v224 = vor.u32 %v222, %v223
    %v225 = vsub.s32 4294967266, %v220
    %v226 = vadd.s32 %v225, 127
    %v227 = vshll.u32 %v226, 23
    %v228 = vor.u32 4788187, %v227
    %v229 = vand.u32 2147483647, %v228
    %v231 = vcvt.s32.f32 %v224
    %v232 = vmul.f32 %v231, %v229
    %v233 = vxor.u32 %v232, 2147483648
    %v234 = vsel %vm151, %v233, %v232
    %v235 = vsub.s32 4, %v211
    %v236 = vsel %vm151, %v235, %v211
    %v237 = vsel %vm150, %v41, %v234
    %v238 = vsel %vm150, 0, %v236
    %v239 = vcosq.f32.pop %v237
    %v240 = vsinq.f32.pop %v237
    %vm241 = vweird.f32 %v41
    %v242 = vadd.s32 %v238, 3
    %v243 = vand.u32 %v242, 3
    %vm244 = vcmp.lt.s32.totalorder %v243, 2
    %vm245 = vcmp.eq.s32.totalorder %v243, 0
    %v246 = vxor.u32 %v240, 2147483648
    %v247 = vsel %vm245, %v239, %v246
    %vm248 = vcmp.eq.s32.totalorder %v243, 2
    %v249 = vxor.u32 %v239, 2147483648
    %v250 = vsel %vm248, %v249, %v240
    %v251 = vsel %vm244, %v247, %v250
    %v252 = vsel %vm241, nan, %v251
    %v253 = vand.u32 2147483647, %v34
    %vm254 = vcmp.le.f32.partialorder %v253, 0.7853982
    %vm255 = vcmp.lt.s32.totalorder %v34, 0
    %v256 = vand.u32 %v34, 2139095040
    %v257 = vshrl.u32 %v256, 23
    %v258 = vsub.s32 %v257, 127
    %v259 = vand.u32 2147483647, %v34
    %v260 = vand.u32 %v259, 8388607
    %v261 = vor.u32 %v260, 8388608
    %v262 = vsub.s32 0, %v261
    %v263 = vadd.s32 %v258, 1
    %vm264 = vcmp.gt.s32.totalorder %v263, 0
    %v265 = vsel %vm264, %v263, 0
    %v266 = vshrl.u32 %v265, 5
    %v267 = vand.u32 %v265, 31
    %v268 = vsub.s32 32, %v267
    %v269 = vshrl.u32 683565275, %v268
    %v270 = vshll.u32 683565275, %v267
    %v271 = vshrl.u32 2475754826, %v268
    %v272 = vor.u32 %v270, %v271
    %v273 = vshll.u32 2475754826, %v267
    %v274 = vshrl.u32 2131351028, %v268
    %v275 = vor.u32 %v273, %v274
    %v276 = vshll.u32 2131351028, %v267
    %v277 = vshrl.u32 2102212464, %v268
    %v278 = vor.u32 %v276, %v277
    %v279 = vshll.u32 2102212464, %v267
    %v280 = vshrl.u32 920167782, %v268
    %v281 = vor.u32 %v279, %v280
    %v282 = vshll.u32 920167782, %v267
    %v283 = vshrl.u32 1326507024, %v268
    %v284 = vor.u32 %v282, %v283
    %vm285 = vcmp.lt.s32.totalorder %v266, 1
    %vm286 = vcmp.lt.s32.totalorder %v266, 2
    %vm287 = vcmp.lt.s32.totalorder %v266, 3
    %vm288 = vcmp.lt.s32.totalorder %v266, 4
    %v289 = vsel %vm285, %v269, %v272
    %v290 = vsel %vm288, %v278, 2102212464
    %v291 = vsel %vm287, %v275, %v290
    %v292 = vsel %vm286, %v289, %v291
    %v293 = vsel %vm285, %v272, %v275
    %v294 = vsel %vm288, %v281, 920167782
    %v295 = vsel %vm287, %v278, %v294
    %v296 = vsel %vm286, %v293, %v295
    %v297 = vsel %vm285, %v275, %v278
    %v298 = vsel %vm288, %v284, 1326507024
    %v299 = vsel %vm287, %v281, %v298
    %v300 = vsel %vm286, %v297, %v299
    %v301 = vshll.u32 %v261, 8
    %v302 = vmul.u32.u64.compose %v301, %v300
    %v303 = vextract.low.u32 %v302
    %v304 = vextract.high.u32 %v302
    %v305 = vmul.u32.u64.compose %v301, %v296
    %v306 = vextract.low.u32 %v305
    %v307 = vextract.high.u32 %v305
    %v308 = vmul.u32 %v301, %v292
    %v309 = vadd.s32 %v304, %v306
    %vm310 = vc.u32 %v304, %v306
    %v311 = vadd.s32 %v307, 1
    %v312 = vsel %vm310, %v311, %v307
    %v313 = vadd.s32 %v308, %v312
    %v314 = vadd.s32 %v313, 536870912
    %v315 = vshrl.u32 %v314, 30
    %v316 = vshll.u32 %v315, 30
    %v317 = vsub.s32 %v313, %v316
    %vm318 = vcmp.lt.s32.totalorder %v317, 0
    %v319 = vsub.s32 0, %v317
    %v320 = vsel %vm318, %v319, %v317
    %v321 = vclz %v320
    %v322 = vsub.s32 %v321, 2
    %vm323 = vcmp.gt.s32.totalorder 0, %v322
    %v324 = vsel %vm323, 0, %v322
    %v325 = vsub.s32 32, %v324
    %v326 = vshll.u32 %v317, %v324
    %v327 = vshrl.u32 %v309, %v325
    %v328 = vor.u32 %v326, %v327
    %v329 = vsub.s32 4294967266, %v324
    %v330 = vadd.s32 %v329, 127
    %v331 = vshll.u32 %v330, 23
    %v332 = vor.u32 4788187, %v331
    %v333 = vand.u32 2147483647, %v332
    %v335 = vcvt.s32.f32 %v328
    %v336 = vmul.f32 %v335, %v333
    %v337 = vxor.u32 %v336, 2147483648
    %v338 = vsel %vm255, %v337, %v336
    %v339 = vsub.s32 4, %v315
    %v340 = vsel %vm255, %v339, %v315
    %v341 = vsel %vm254, %v34, %v338
    %v342 = vsel %vm254, 0, %v340
    %v343 = vcosq.f32.pop %v341
    %v344 = vsinq.f32.pop %v341
    %vm345 = vweird.f32 %v34
    %v346 = vand.u32 %v342, 3
    %vm347 = vcmp.lt.s32.totalorder %v346, 2
    %vm348 = vcmp.eq.s32.totalorder %v346, 0
    %v349 = vxor.u32 %v344, 2147483648
    %v350 = vsel %vm348, %v343, %v349
    %vm351 = vcmp.eq.s32.totalorder %v346, 2
    %v352 = vxor.u32 %v343, 2147483648
    %v353 = vsel %vm351, %v352, %v344
    %v354 = vsel %vm347, %v350, %v353
    %v355 = vsel %vm345, nan, %v354
    %v356 = vand.u32 2147483647, %v34
    %vm357 = vcmp.le.f32.partialorder %v356, 0.7853982
    %vm358 = vcmp.lt.s32.totalorder %v34, 0
    %v359 = vand.u32 %v34, 2139095040
    %v360 = vshrl.u32 %v359, 23
    %v361 = vsub.s32 %v360, 127
    %v362 = vand.u32 2147483647, %v34
    %v363 = vand.u32 %v362, 8388607
    %v364 = vor.u32 %v363, 8388608
    %v365 = vsub.s32 0, %v364
    %v366 = vadd.s32 %v361, 1
    %vm367 = vcmp.gt.s32.totalorder %v366, 0
    %v368 = vsel %vm367, %v366, 0
    %v369 = vshrl.u32 %v368, 5
    %v370 = vand.u32 %v368, 31
    %v371 = vsub.s32 32, %v370
    %v372 = vshrl.u32 683565275, %v371
    %v373 = vshll.u32 683565275, %v370
    %v374 = vshrl.u32 2475754826, %v371
    %v375 = vor.u32 %v373, %v374
    %v376 = vshll.u32 2475754826, %v370
    %v377 = vshrl.u32 2131351028, %v371
    %v378 = vor.u32 %v376, %v377
    %v379 = vshll.u32 2131351028, %v370
    %v380 = vshrl.u32 2102212464, %v371
    %v381 = vor.u32 %v379, %v380
    %v382 = vshll.u32 2102212464, %v370
    %v383 = vshrl.u32 920167782, %v371
    %v384 = vor.u32 %v382, %v383
    %v385 = vshll.u32 920167782, %v370
    %v386 = vshrl.u32 1326507024, %v371
    %v387 = vor.u32 %v385, %v386
    %vm388 = vcmp.lt.s32.totalorder %v369, 1
    %vm389 = vcmp.lt.s32.totalorder %v369, 2
    %vm390 = vcmp.lt.s32.totalorder %v369, 3
    %vm391 = vcmp.lt.s32.totalorder %v369, 4
    %v392 = vsel %vm388, %v372, %v375
    %v393 = vsel %vm391, %v381, 2102212464
    %v394 = vsel %vm390, %v378, %v393
    %v395 = vsel %vm389, %v392, %v394
    %v396 = vsel %vm388, %v375, %v378
    %v397 = vsel %vm391, %v384, 920167782
    %v398 = vsel %vm390, %v381, %v397
    %v399 = vsel %vm389, %v396, %v398
    %v400 = vsel %vm388, %v378, %v381
    %v401 = vsel %vm391, %v387, 1326507024
    %v402 = vsel %vm390, %v384, %v401
    %v403 = vsel %vm389, %v400, %v402
    %v404 = vshll.u32 %v364, 8
    %v405 = vmul.u32.u64.compose %v404, %v403
    %v406 = vextract.low.u32 %v405
    %v407 = vextract.high.u32 %v405
    %v408 = vmul.u32.u64.compose %v404, %v399
    %v409 = vextract.low.u32 %v408
    %v410 = vextract.high.u32 %v408
    %v411 = vmul.u32 %v404, %v395
    %v412 = vadd.s32 %v407, %v409
    %vm413 = vc.u32 %v407, %v409
    %v414 = vadd.s32 %v410, 1
    %v415 = vsel %vm413, %v414, %v410
    %v416 = vadd.s32 %v411, %v415
    %v417 = vadd.s32 %v416, 536870912
    %v418 = vshrl.u32 %v417, 30
    %v419 = vshll.u32 %v418, 30
    %v420 = vsub.s32 %v416, %v419
    %vm421 = vcmp.lt.s32.totalorder %v420, 0
    %v422 = vsub.s32 0, %v420
    %v423 = vsel %vm421, %v422, %v420
    %v424 = vclz %v423
    %v425 = vsub.s32 %v424, 2
    %vm426 = vcmp.gt.s32.totalorder 0, %v425
    %v427 = vsel %vm426, 0, %v425
    %v428 = vsub.s32 32, %v427
    %v429 = vshll.u32 %v420, %v427
    %v430 = vshrl.u32 %v412, %v428
    %v431 = vor.u32 %v429, %v430
    %v432 = vsub.s32 4294967266, %v427
    %v433 = vadd.s32 %v432, 127
    %v434 = vshll.u32 %v433, 23
    %v435 = vor.u32 4788187, %v434
    %v436 = vand.u32 2147483647, %v435
    %v438 = vcvt.s32.f32 %v431
    %v439 = vmul.f32 %v438, %v436
    %v440 = vxor.u32 %v439, 2147483648
    %v441 = vsel %vm358, %v440, %v439
    %v442 = vsub.s32 4, %v418
    %v443 = vsel %vm358, %v442, %v418
    %v444 = vsel %vm357, %v34, %v441
    %v445 = vsel %vm357, 0, %v443
    %v446 = vcosq.f32.pop %v444
    %v447 = vsinq.f32.pop %v444
    %vm448 = vweird.f32 %v34
    %v449 = vadd.s32 %v445, 3
    %v450 = vand.u32 %v449, 3
    %vm451 = vcmp.lt.s32.totalorder %v450, 2
    %vm452 = vcmp.eq.s32.totalorder %v450, 0
    %v453 = vxor.u32 %v447, 2147483648
    %v454 = vsel %vm452, %v446, %v453
    %vm455 = vcmp.eq.s32.totalorder %v450, 2
    %v456 = vxor.u32 %v446, 2147483648
    %v457 = vsel %vm455, %v456, %v447
    %v458 = vsel %vm451, %v454, %v457
    %v459 = vsel %vm448, nan, %v458
    %v460 = vand.u32 2147483647, %v45
    %vm461 = vcmp.le.f32.partialorder %v460, 0.7853982
    %vm462 = vcmp.lt.s32.totalorder %v45, 0
    %v463 = vand.u32 %v45, 2139095040
    %v464 = vshrl.u32 %v463, 23
    %v465 = vsub.s32 %v464, 127
    %v466 = vand.u32 2147483647, %v45
    %v467 = vand.u32 %v466, 8388607
    %v468 = vor.u32 %v467, 8388608
    %v469 = vsub.s32 0, %v468
    %v470 = vadd.s32 %v465, 1
    %vm471 = vcmp.gt.s32.totalorder %v470, 0
    %v472 = vsel %vm471, %v470, 0
    %v473 = vshrl.u32 %v472, 5
    %v474 = vand.u32 %v472, 31
    %v475 = vsub.s32 32, %v474
    %v476 = vshrl.u32 683565275, %v475
    %v477 = vshll.u32 683565275, %v474
    %v478 = vshrl.u32 2475754826, %v475
    %v479 = vor.u32 %v477, %v478
    %v480 = vshll.u32 2475754826, %v474
    %v481 = vshrl.u32 2131351028, %v475
    %v482 = vor.u32 %v480, %v481
    %v483 = vshll.u32 2131351028, %v474
    %v484 = vshrl.u32 2102212464, %v475
    %v485 = vor.u32 %v483, %v484
    %v486 = vshll.u32 2102212464, %v474
    %v487 = vshrl.u32 920167782, %v475
    %v488 = vor.u32 %v486, %v487
    %v489 = vshll.u32 920167782, %v474
    %v490 = vshrl.u32 1326507024, %v475
    %v491 = vor.u32 %v489, %v490
    %vm492 = vcmp.lt.s32.totalorder %v473, 1
    %vm493 = vcmp.lt.s32.totalorder %v473, 2
    %vm494 = vcmp.lt.s32.totalorder %v473, 3
    %vm495 = vcmp.lt.s32.totalorder %v473, 4
    %v496 = vsel %vm492, %v476, %v479
    %v497 = vsel %vm495, %v485, 2102212464
    %v498 = vsel %vm494, %v482, %v497
    %v499 = vsel %vm493, %v496, %v498
    %v500 = vsel %vm492, %v479, %v482
    %v501 = vsel %vm495, %v488, 920167782
    %v502 = vsel %vm494, %v485, %v501
    %v503 = vsel %vm493, %v500, %v502
    %v504 = vsel %vm492, %v482, %v485
    %v505 = vsel %vm495, %v491, 1326507024
    %v506 = vsel %vm494, %v488, %v505
    %v507 = vsel %vm493, %v504, %v506
    %v508 = vshll.u32 %v468, 8
    %v509 = vmul.u32.u64.compose %v508, %v507
    %v510 = vextract.low.u32 %v509
    %v511 = vextract.high.u32 %v509
    %v512 = vmul.u32.u64.compose %v508, %v503
    %v513 = vextract.low.u32 %v512
    %v514 = vextract.high.u32 %v512
    %v515 = vmul.u32 %v508, %v499
    %v516 = vadd.s32 %v511, %v513
    %vm517 = vc.u32 %v511, %v513
    %v518 = vadd.s32 %v514, 1
    %v519 = vsel %vm517, %v518, %v514
    %v520 = vadd.s32 %v515, %v519
    %v521 = vadd.s32 %v520, 536870912
    %v522 = vshrl.u32 %v521, 30
    %v523 = vshll.u32 %v522, 30
    %v524 = vsub.s32 %v520, %v523
    %vm525 = vcmp.lt.s32.totalorder %v524, 0
    %v526 = vsub.s32 0, %v524
    %v527 = vsel %vm525, %v526, %v524
    %v528 = vclz %v527
    %v529 = vsub.s32 %v528, 2
    %vm530 = vcmp.gt.s32.totalorder 0, %v529
    %v531 = vsel %vm530, 0, %v529
    %v532 = vsub.s32 32, %v531
    %v533 = vshll.u32 %v524, %v531
    %v534 = vshrl.u32 %v516, %v532
    %v535 = vor.u32 %v533, %v534
    %v536 = vsub.s32 4294967266, %v531
    %v537 = vadd.s32 %v536, 127
    %v538 = vshll.u32 %v537, 23
    %v539 = vor.u32 4788187, %v538
    %v540 = vand.u32 2147483647, %v539
    %v542 = vcvt.s32.f32 %v535
    %v543 = vmul.f32 %v542, %v540
    %v544 = vxor.u32 %v543, 2147483648
    %v545 = vsel %vm462, %v544, %v543
    %v546 = vsub.s32 4, %v522
    %v547 = vsel %vm462, %v546, %v522
    %v548 = vsel %vm461, %v45, %v545
    %v549 = vsel %vm461, 0, %v547
    %v550 = vcosq.f32.pop %v548
    %v551 = vsinq.f32.pop %v548
    %vm552 = vweird.f32 %v45
    %v553 = vand.u32 %v549, 3
    %vm554 = vcmp.lt.s32.totalorder %v553, 2
    %vm555 = vcmp.eq.s32.totalorder %v553, 0
    %v556 = vxor.u32 %v551, 2147483648
    %v557 = vsel %vm555, %v550, %v556
    %vm558 = vcmp.eq.s32.totalorder %v553, 2
    %v559 = vxor.u32 %v550, 2147483648
    %v560 = vsel %vm558, %v559, %v551
    %v561 = vsel %vm554, %v557, %v560
    %v562 = vsel %vm552, nan, %v561
    %v563 = vand.u32 2147483647, %v45
    %vm564 = vcmp.le.f32.partialorder %v563, 0.7853982
    %vm565 = vcmp.lt.s32.totalorder %v45, 0
    %v566 = vand.u32 %v45, 2139095040
    %v567 = vshrl.u32 %v566, 23
    %v568 = vsub.s32 %v567, 127
    %v569 = vand.u32 2147483647, %v45
    %v570 = vand.u32 %v569, 8388607
    %v571 = vor.u32 %v570, 8388608
    %v572 = vsub.s32 0, %v571
    %v573 = vadd.s32 %v568, 1
    %vm574 = vcmp.gt.s32.totalorder %v573, 0
    %v575 = vsel %vm574, %v573, 0
    %v576 = vshrl.u32 %v575, 5
    %v577 = vand.u32 %v575, 31
    %v578 = vsub.s32 32, %v577
    %v579 = vshrl.u32 683565275, %v578
    %v580 = vshll.u32 683565275, %v577
    %v581 = vshrl.u32 2475754826, %v578
    %v582 = vor.u32 %v580, %v581
    %v583 = vshll.u32 2475754826, %v577
    %v584 = vshrl.u32 2131351028, %v578
    %v585 = vor.u32 %v583, %v584
    %v586 = vshll.u32 2131351028, %v577
    %v587 = vshrl.u32 2102212464, %v578
    %v588 = vor.u32 %v586, %v587
    %v589 = vshll.u32 2102212464, %v577
    %v590 = vshrl.u32 920167782, %v578
    %v591 = vor.u32 %v589, %v590
    %v592 = vshll.u32 920167782, %v577
    %v593 = vshrl.u32 1326507024, %v578
    %v594 = vor.u32 %v592, %v593
    %vm595 = vcmp.lt.s32.totalorder %v576, 1
    %vm596 = vcmp.lt.s32.totalorder %v576, 2
    %vm597 = vcmp.lt.s32.totalorder %v576, 3
    %vm598 = vcmp.lt.s32.totalorder %v576, 4
    %v599 = vsel %vm595, %v579, %v582
    %v600 = vsel %vm598, %v588, 2102212464
    %v601 = vsel %vm597, %v585, %v600
    %v602 = vsel %vm596, %v599, %v601
    %v603 = vsel %vm595, %v582, %v585
    %v604 = vsel %vm598, %v591, 920167782
    %v605 = vsel %vm597, %v588, %v604
    %v606 = vsel %vm596, %v603, %v605
    %v607 = vsel %vm595, %v585, %v588
    %v608 = vsel %vm598, %v594, 1326507024
    %v609 = vsel %vm597, %v591, %v608
    %v610 = vsel %vm596, %v607, %v609
    %v611 = vshll.u32 %v571, 8
    %v612 = vmul.u32.u64.compose %v611, %v610
    %v613 = vextract.low.u32 %v612
    %v614 = vextract.high.u32 %v612
    %v615 = vmul.u32.u64.compose %v611, %v606
    %v616 = vextract.low.u32 %v615
    %v617 = vextract.high.u32 %v615
    %v618 = vmul.u32 %v611, %v602
    %v619 = vadd.s32 %v614, %v616
    %vm620 = vc.u32 %v614, %v616
    %v621 = vadd.s32 %v617, 1
    %v622 = vsel %vm620, %v621, %v617
    %v623 = vadd.s32 %v618, %v622
    %v624 = vadd.s32 %v623, 536870912
    %v625 = vshrl.u32 %v624, 30
    %v626 = vshll.u32 %v625, 30
    %v627 = vsub.s32 %v623, %v626
    %vm628 = vcmp.lt.s32.totalorder %v627, 0
    %v629 = vsub.s32 0, %v627
    %v630 = vsel %vm628, %v629, %v627
    %v631 = vclz %v630
    %v632 = vsub.s32 %v631, 2
    %vm633 = vcmp.gt.s32.totalorder 0, %v632
    %v634 = vsel %vm633, 0, %v632
    %v635 = vsub.s32 32, %v634
    %v636 = vshll.u32 %v627, %v634
    %v637 = vshrl.u32 %v619, %v635
    %v638 = vor.u32 %v636, %v637
    %v639 = vsub.s32 4294967266, %v634
    %v640 = vadd.s32 %v639, 127
    %v641 = vshll.u32 %v640, 23
    %v642 = vor.u32 4788187, %v641
    %v643 = vand.u32 2147483647, %v642
    %v645 = vcvt.s32.f32 %v638
    %v646 = vmul.f32 %v645, %v643
    %v647 = vxor.u32 %v646, 2147483648
    %v648 = vsel %vm565, %v647, %v646
    %v649 = vsub.s32 4, %v625
    %v650 = vsel %vm565, %v649, %v625
    %v651 = vsel %vm564, %v45, %v648
    %v652 = vsel %vm564, 0, %v650
    %v653 = vcosq.f32.pop %v651
    %v654 = vsinq.f32.pop %v651
    %vm655 = vweird.f32 %v45
    %v656 = vadd.s32 %v652, 3
    %v657 = vand.u32 %v656, 3
    %vm658 = vcmp.lt.s32.totalorder %v657, 2
    %vm659 = vcmp.eq.s32.totalorder %v657, 0
    %v660 = vxor.u32 %v654, 2147483648
    %v661 = vsel %vm659, %v653, %v660
    %vm662 = vcmp.eq.s32.totalorder %v657, 2
    %v663 = vxor.u32 %v653, 2147483648
    %v664 = vsel %vm662, %v663, %v654
    %v665 = vsel %vm658, %v661, %v664
    %v666 = vsel %vm655, nan, %v665
    %v667 = vmul.f32 %v148, %v562
    %v668 = vmul.f32 %v148, %v666
    %v669 = vmul.f32 %v355, %v252
    %v670 = vmul.f32 %v459, %v667
    %v671 = vsub.f32 %v669, %v670
    %v672 = vmul.f32 %v668, %v668
    %v673 = vmul.f32 %v671, %v671
    %v674 = vadd.f32 %v672, %v673
    %v675 = vrsqrt.pop %v674
    %v676 = vmul.f32 %v674, %v675
    %vm677 = vcmp.eq.f32.partialorder %v674, inf
    %v678 = vsel %vm677, %v674, %v676
    %vm679 = vcmp.eq.f32.partialorder %v674, 0.0
    %v680 = vand.u32 %v674, 2147483648
    %v681 = vsel %vm679, %v680, %v678
    %v682 = vmul.f32 %v459, %v252
    %v683 = vmul.f32 %v355, %v667
    %v684 = vadd.f32 %v682, %v683
    %v685 = vand.u32 2147483647, %v684
    %v686 = vand.u32 2147483647, %v681
    %v687 = vmin.f32 %v685, %v686
    %v688 = vmax.f32 %v685, %v686
    %v689 = vrcp.pop %v688
    %v690 = vmul.f32 %v687, %v689
    %v691 = vmul.f32 %v690, %v690
    %v692 = vmul.f32 0.002785687, %v691
    %v693 = vadd.f32 %v692, -0.015866
    %v694 = vmul.f32 %v693, %v691
    %v695 = vadd.f32 %v694, 0.04247222
    %v696 = vmul.f32 %v695, %v691
    %v697 = vadd.f32 %v696, -0.074975304
    %v698 = vmul.f32 %v697, %v691
    %v699 = vadd.f32 %v698, 0.1064488
    %v700 = vmul.f32 %v699, %v691
    %v701 = vadd.f32 %v700, -0.14207031
    %v702 = vmul.f32 %v701, %v691
    %v703 = vadd.f32 %v702, 0.19993454
    %v704 = vmul.f32 %v703, %v691
    %v705 = vadd.f32 %v704, -0.33333147
    %v706 = vmul.f32 %v705, %v691
    %v707 = vmul.f32 %v706, %v690
    %v708 = vadd.f32 %v707, %v690
    %vm709 = vcmp.gt.f32.partialorder %v686, %v685
    %v710 = vsub.f32 1.5707964, %v708
    %v711 = vsel %vm709, %v710, %v708
    %vm712 = vcmp.lt.f32.partialorder %v684, 0.0
    %v713 = vsub.f32 3.1415927, %v711
    %v714 = vsel %vm712, %v713, %v711
    %vm715 = vcmp.lt.s32.totalorder %v684, 0
    %v716 = vsel %vm715, 3.1415927, 0.0
    %vm717 = vcmp.eq.f32.partialorder %v681, 0.0
    %v718 = vsel %vm717, %v716, %v714
    %vm719 = vcmp.ne.f32.partialorder %v684, %v684
    %vm720 = vcmp.ne.f32.partialorder %v681, %v681
    %vm721 = vmor %vm719, %vm720
    %v722 = vsel %vm721, nan, %v718
    %vm723 = vcmp.lt.f32.partialorder %v684, 0.0
    %v724 = vsel %vm723, 2.3561945, 0.7853982
    %vm725 = vcmp.eq.s32.totalorder %v685, inf
    %vm726 = vcmp.eq.s32.totalorder %v686, inf
    %vm727 = vmand %vm725, %vm726
    %v728 = vsel %vm727, %v724, %v722
    %v729 = vand.u32 2147483647, %v728
    %v730 = vand.u32 %v681, 2147483648
    %v731 = vor.u32 %v729, %v730
    %v732 = vld [vmem:[#allocation2] sm:$0xff]
    %v733 = vadd.f32 %v731, 0.0
    %v734 = vadd.f32 %v732, %v733
    %735 = vst [vmem:[#allocation2] sm:$0xff] %v734
    // Predicated region
    $region14: #{tpu_custom_call.1} parent=1 // pred_check
      %p736 = pneg %p27
    $region15: #{tpu_custom_call.1} parent=1 // pred_check_branch
      %738 = sbr.rel (%p736) target = $region17
    $region16: #{tpu_custom_call.1} parent=1 // pred_region
      %v739 = vld [vmem:[#allocation2] sm:$0xff]
      %740 = vadd.xlane.f32.xlu0 %v739
      %v741 = vpop.xlane.xlu0 %740
      %v742 = vrot.slane %v741, 4
      %v743 = vadd.f32 %v741, %v742
      %v744 = vrot.slane %v743, 2
      %v745 = vadd.f32 %v743, %v744
      %v746 = vrot.slane %v745, 1
      %v747 = vadd.f32 %v745, %v746
      %s748 = vtos %v747
      %v749 = vstv %s748
      %vm750 = vcmask 0
      %751 = vst.msk [vmem:[#allocation6] sm:$0x1] %vm750, %v749
    $region17: #{tpu_custom_call.1} parent=1 // pred_fallthru
      _
    // Predicated region
    $region18: #{tpu_custom_call.1} parent=1 // pred_check
      _
    $region19: #{tpu_custom_call.1} parent=1 // pred_check_branch
      %753 = sbr.rel (0) target = $region21
    $region20: #{tpu_custom_call.1} parent=1 // pred_region
      %s755 = ssub.s32 16, 16
      %756 = vsyncadd [#allocation5], %s755
      %s758 = sshll.u32 [#allocation6], 4
      %s759 = int_to_ptr.vmem [resolvable:$true] %s758
      %761 = dma.vmem_to_hbm [thread:$0]  %s759, 16, %s1, [#allocation5]
    $region21: #{tpu_custom_call.1} parent=1 // pred_fallthru
      _
    // Predicated region
    $region22: #{tpu_custom_call.1} parent=1 // pred_check
      _
    $region23: #{tpu_custom_call.1} parent=1 // pred_check_branch
      %763 = sbr.rel (0) target = $region25
    $region24: #{tpu_custom_call.1} parent=1 // pred_region
      %764 = dma.done [#allocation5], 16
    $region25: #{tpu_custom_call.1} parent=1 // pred_fallthru
      _
    %765 = vsyncpa [#allocation4], 1
    %766 = vsyncpa [#allocation5], 1

</llo_original>
